<compile_context>
chip_gen: v6e
topology: v6e:2x2x1
jax: 0.10.0
libtpu: 0.0.40
codegen_flags: <defaults>
</compile_context>

<pallas_src>
import jax
import jax.numpy as jnp
from jax import lax
from jax.experimental import pallas as pl
from jax.experimental.pallas import tpu as pltpu


def _round_up(x: int, m: int) -> int:
    return (x + m - 1) // m * m


def _cdiv(a: int, b: int) -> int:
    return -(-a // b)


def prepare_cls_table(cls_embedding):
    """One-time (init-time) prep of the embedding table.

    Reshapes (cls_count, 1, hidden) -> (Kpad, hidden) with zero padding on the
    contraction dim.  Kpad always reserves at least one extra zero row (used as
    the padding-index remap target) and is a multiple of 128 (lane tile).
    Do this once at parameter-init time, not per forward call.
    """
    cls_count, _, hidden = cls_embedding.shape
    kpad = max(128, _round_up(cls_count + 1, 128))
    table = cls_embedding.reshape(cls_count, hidden)
    return jnp.pad(table, ((0, kpad - cls_count), (0, 0)))


def _choose_batch_tile(bs: int) -> int:
    # Bigger tiles amortize the ~0.35us per-grid-step overhead and yield larger
    # HBM DMAs; out + counts at bt=512, H=256 f32 is well under 2 MiB.
    bt = min(512, _round_up(bs, 8))
    # For large batches keep >= 2 grid steps so both v7x TensorCores get work
    # under dimension_semantics=("parallel",).
    if bs > 256 and _round_up(bs, bt) == bt:
        bt = _round_up(_cdiv(bs, 2), 8)
    return bt


def _make_kernel(dc: int, padding_index: int, zero_row: int,
                 enable_pos_embed: bool):
    apply_mask = dc > 1  # PyTorch only masks when descriptor_count > 1

    def kernel(idx_ref, table_ref, *rest):
        if enable_pos_embed:
            pos_ref, out_ref = rest
        else:
            pos_ref, out_ref = None, rest[0]

        idx = idx_ref[...]                                    # (Bt, dc) int32
        bt = idx.shape[0]
        kpad = table_ref.shape[0]

        if apply_mask:
            # Remap padding entries once on the tiny (Bt, dc) tile to a
            # guaranteed-zero table row instead of masking each (Bt, Kpad)
            # one-hot (saves ~dc full-tile VPU multiplies per step).
            idx = jnp.where(idx == padding_index, zero_row, idx)

        # counts[b, c] = number of descriptors d with idx[b, d] == c.
        # dc is small & static -> Python-unrolled VPU compares.  Indices never
        # feed addressing, so out-of-range values just contribute zero.
        # One-hot math stays in f32/int32 (v5e VPU has no bf16).
        k_iota = lax.broadcasted_iota(jnp.int32, (bt, kpad), 1)
        counts = jnp.zeros((bt, kpad), jnp.float32)
        for d in range(dc):
            counts = counts + (idx[:, d:d + 1] == k_iota).astype(jnp.float32)

        # Feed the MXU the table in its storage dtype; counts are small exact
        # integers (0..dc), so casting them is lossless and avoids
        # materializing an f32 copy of the whole table every grid step.
        table = table_ref[...]                                # (Kpad, H)
        if table.dtype != jnp.float32:
            counts = counts.astype(table.dtype)
        out = jnp.dot(counts, table, preferred_element_type=jnp.float32)

        if pos_ref is not None:
            # Pre-reduced positional contribution, broadcast over the batch tile.
            out = out + pos_ref[...].astype(jnp.float32)      # (1, H)

        out_ref[...] = out.astype(out_ref.dtype)

    return kernel


def cls_embedding_forward(cls_type, table, pos_embedding, *,
                          enable_pos_embed: bool = False,
                          padding_index: int = 30):
    """Pallas implementation of ClsEmbedding.forward.

    cls_type:       (bs, descriptor_count) int
    table:          (Kpad, hidden) float  -- output of prepare_cls_table()
    pos_embedding:  (1, cls_descriptor_count, hidden) float
    returns:        (bs, 1, hidden) in the table dtype
    """
    bs, dc = cls_type.shape
    kpad, hidden = table.shape
    out_dtype = table.dtype

    bt = _choose_batch_tile(bs)
    bs_pad = _round_up(bs, bt)

    idx = cls_type.astype(jnp.int32)
    idx = jnp.pad(idx, ((0, bs_pad - bs), (0, 0)),
                  constant_values=padding_index)

    inputs = [idx, table]
    extra_specs = []
    if enable_pos_embed:
        # pos is added to every descriptor regardless of the padding mask,
        # so its contribution to the descriptor-sum is just sum_d pos[d].
        pos_sum = pos_embedding[:, :dc, :].astype(jnp.float32).sum(axis=1)
        inputs.append(pos_sum)                                # (1, H)
        extra_specs.append(pl.BlockSpec((1, hidden), lambda i: (0, 0)))

    # zero_row = last padded row, guaranteed zero by prepare_cls_table.
    kernel = _make_kernel(dc, padding_index, kpad - 1, enable_pos_embed)

    idx_spec = pl.BlockSpec((bt, dc), lambda i: (i, 0))
    out_spec = pl.BlockSpec((bt, hidden), lambda i: (i, 0))

    # Explicit VMEM budget: 1x resident table + double-buffered small tiles
    # + generous headroom for compiler scratch.
    table_bytes = kpad * hidden * table.dtype.itemsize
    out_bytes = bt * hidden * jnp.dtype(out_dtype).itemsize
    idx_bytes = bt * dc * 4
    pos_bytes = hidden * 4 if enable_pos_embed else 0
    vmem_limit = min(
        int(table_bytes + 2 * (out_bytes + idx_bytes + pos_bytes) + (8 << 20)),
        100 << 20)

    compiler_params = pltpu.CompilerParams(
        dimension_semantics=("parallel",),
        vmem_limit_bytes=vmem_limit,
    )

    def call(table_spec):
        return pl.pallas_call(
            kernel,
            out_shape=jax.ShapeDtypeStruct((bs_pad, hidden), out_dtype),
            grid=(bs_pad // bt,),
            in_specs=[idx_spec, table_spec] + extra_specs,
            out_specs=out_spec,
            compiler_params=compiler_params,
        )(*inputs)

    try:
        # Table block is grid-invariant (constant index_map): single-buffer it
        # so VMEM (v7x: 64 MiB) does not hold two copies for nothing.
        out = call(pl.BlockSpec((kpad, hidden), lambda i: (0, 0),
                                pipeline_mode=pl.Buffered(1)))
    except Exception:
        # Fallback for jax versions that reject pipeline_mode on this path.
        out = call(pl.BlockSpec((kpad, hidden), lambda i: (0, 0)))

    return out[:bs].reshape(bs, 1, hidden)


def cls_embedding_reference(cls_type, cls_embedding, pos_embedding, *,
                            enable_pos_embed: bool = False,
                            padding_index: int = 30):
    """Pure-JAX reference matching the (intended) PyTorch semantics."""
    bs, dc = cls_type.shape
    hidden = cls_embedding.shape[-1]
    idx = cls_type.reshape(-1)
    tok = cls_embedding[idx]                               # (bs*dc, 1, H)
    if dc > 1:
        mask = (idx != padding_index).astype(tok.dtype)[:, None, None]
        tok = tok * mask
        tok = tok.reshape(bs, dc, hidden)
    else:
        tok = tok.reshape(bs, 1, hidden)
    if enable_pos_embed:
        tok = tok + pos_embedding[:, :dc, :]
    if dc > 1:
        tok = tok.sum(axis=1, keepdims=True)
    return tok


if __name__ == "__main__":
    # Module hyper-parameters (module defaults; hidden=256 is lane-dense).
    hidden_size = 256
    cls_count = 50
    cls_descriptor_count = 5
    padding_index = 30

    bs = 2

    key = jax.random.PRNGKey(0)
    k_emb, k_pos, k_idx = jax.random.split(key, 3)

    # Deterministic parameter init (pos made non-zero to exercise the pos path).
    cls_embedding = 0.02 * jax.random.normal(
        k_emb, (cls_count, 1, hidden_size), dtype=jnp.float32)
    pos_embedding = 0.02 * jax.random.normal(
        k_pos, (1, cls_descriptor_count, hidden_size), dtype=jnp.float32)

    # One-time, init-time table prep (not a per-forward-call cost).
    table = prepare_cls_table(cls_embedding)
    table = jax.block_until_ready(table)

    # Example input: class-type indices, with one padding index to exercise masking.
    cls_type = jax.random.randint(
        k_idx, (bs, cls_descriptor_count), 0, cls_count, dtype=jnp.int32)
    cls_type = cls_type.at[0, 2].set(padding_index)

    # Case 1: enable_pos_embed=False (module default).
    out = cls_embedding_forward(
        cls_type, table, pos_embedding,
        enable_pos_embed=False, padding_index=padding_index)
    out = jax.block_until_ready(out)
    ref = cls_embedding_reference(
        cls_type, cls_embedding, pos_embedding,
        enable_pos_embed=False, padding_index=padding_index)
    assert out.shape == (bs, 1, hidden_size), out.shape
    assert jnp.allclose(out, ref, atol=1e-5, rtol=1e-5)

    # Case 2: enable_pos_embed=True.
    out_p = cls_embedding_forward(
        cls_type, table, pos_embedding,
        enable_pos_embed=True, padding_index=padding_index)
    out_p = jax.block_until_ready(out_p)
    ref_p = cls_embedding_reference(
        cls_type, cls_embedding, pos_embedding,
        enable_pos_embed=True, padding_index=padding_index)
    assert jnp.allclose(out_p, ref_p, atol=1e-5, rtol=1e-5)

    # Case 3: descriptor_count == 1 path (no mask, no sum).
    cls_type_1 = cls_type[:, :1]
    out_1 = cls_embedding_forward(
        cls_type_1, table, pos_embedding,
        enable_pos_embed=True, padding_index=padding_index)
    out_1 = jax.block_until_ready(out_1)
    ref_1 = cls_embedding_reference(
        cls_type_1, cls_embedding, pos_embedding,
        enable_pos_embed=True, padding_index=padding_index)
    assert jnp.allclose(out_1, ref_1, atol=1e-5, rtol=1e-5)

    print("KERNEL_OK")
</pallas_src>

<mosaic_0001>
module attributes {stable_mosaic.version = 11 : i64} {
  func.func @kernel(%arg0: i32, %arg1: memref<8x5xi32, #tpu.memory_space<vmem>>, %arg2: memref<128x256xf32, #tpu.memory_space<vmem>>, %arg3: memref<8x256xf32, #tpu.memory_space<vmem>>) attributes {dimension_semantics = [#tpu.dimension_semantics<parallel>], iteration_bounds = array<i64: 1>, scalar_prefetch = 0 : i64, scratch_operands = 0 : i64, tpu.core_type = #tpu.core_type<tc>, window_params = [{transform_indices = @transform_0, window_bounds = array<i64: 8, 5>}, {pipeline_mode = #tpu.pipeline_mode<synchronous>, transform_indices = @transform_1, window_bounds = array<i64: 128, 256>}, {transform_indices = @transform_2, window_bounds = array<i64: 8, 256>}]} {
    %c0 = arith.constant 0 : index
    %c0_0 = arith.constant 0 : index
    %0 = vector.load %arg1[%c0, %c0_0] : memref<8x5xi32, #tpu.memory_space<vmem>>, vector<8x5xi32>
    %c30_i32 = arith.constant 30 : i32
    %1 = vector.broadcast %c30_i32 : i32 to vector<8x5xi32>
    %2 = arith.cmpi eq, %0, %1 : vector<8x5xi32>
    %c127_i32 = arith.constant 127 : i32
    %3 = vector.broadcast %c127_i32 : i32 to vector<8x5xi32>
    %4 = arith.select %2, %3, %0 : vector<8x5xi1>, vector<8x5xi32>
    %5 = tpu.iota {dimensions = array<i32: 1>} : vector<8x128xi32>
    %cst = arith.constant 0.000000e+00 : f32
    %6 = vector.broadcast %cst : f32 to vector<8x128xf32>
    %7 = vector.extract_strided_slice %4 {offsets = [0, 0], sizes = [8, 1], strides = [1, 1]} : vector<8x5xi32> to vector<8x1xi32>
    %8 = vector.broadcast %7 : vector<8x1xi32> to vector<8x128xi32>
    %9 = arith.cmpi eq, %8, %5 : vector<8x128xi32>
    %10 = arith.extui %9 : vector<8x128xi1> to vector<8x128xi32>
    %11 = arith.sitofp %10 : vector<8x128xi32> to vector<8x128xf32>
    %12 = arith.addf %6, %11 : vector<8x128xf32>
    %13 = vector.extract_strided_slice %4 {offsets = [0, 1], sizes = [8, 1], strides = [1, 1]} : vector<8x5xi32> to vector<8x1xi32>
    %14 = vector.broadcast %13 : vector<8x1xi32> to vector<8x128xi32>
    %15 = arith.cmpi eq, %14, %5 : vector<8x128xi32>
    %16 = arith.extui %15 : vector<8x128xi1> to vector<8x128xi32>
    %17 = arith.sitofp %16 : vector<8x128xi32> to vector<8x128xf32>
    %18 = arith.addf %12, %17 : vector<8x128xf32>
    %19 = vector.extract_strided_slice %4 {offsets = [0, 2], sizes = [8, 1], strides = [1, 1]} : vector<8x5xi32> to vector<8x1xi32>
    %20 = vector.broadcast %19 : vector<8x1xi32> to vector<8x128xi32>
    %21 = arith.cmpi eq, %20, %5 : vector<8x128xi32>
    %22 = arith.extui %21 : vector<8x128xi1> to vector<8x128xi32>
    %23 = arith.sitofp %22 : vector<8x128xi32> to vector<8x128xf32>
    %24 = arith.addf %18, %23 : vector<8x128xf32>
    %25 = vector.extract_strided_slice %4 {offsets = [0, 3], sizes = [8, 1], strides = [1, 1]} : vector<8x5xi32> to vector<8x1xi32>
    %26 = vector.broadcast %25 : vector<8x1xi32> to vector<8x128xi32>
    %27 = arith.cmpi eq, %26, %5 : vector<8x128xi32>
    %28 = arith.extui %27 : vector<8x128xi1> to vector<8x128xi32>
    %29 = arith.sitofp %28 : vector<8x128xi32> to vector<8x128xf32>
    %30 = arith.addf %24, %29 : vector<8x128xf32>
    %31 = vector.extract_strided_slice %4 {offsets = [0, 4], sizes = [8, 1], strides = [1, 1]} : vector<8x5xi32> to vector<8x1xi32>
    %32 = vector.broadcast %31 : vector<8x1xi32> to vector<8x128xi32>
    %33 = arith.cmpi eq, %32, %5 : vector<8x128xi32>
    %34 = arith.extui %33 : vector<8x128xi1> to vector<8x128xi32>
    %35 = arith.sitofp %34 : vector<8x128xi32> to vector<8x128xf32>
    %36 = arith.addf %30, %35 : vector<8x128xf32>
    %c0_1 = arith.constant 0 : index
    %c0_2 = arith.constant 0 : index
    %37 = vector.load %arg2[%c0_1, %c0_2] : memref<128x256xf32, #tpu.memory_space<vmem>>, vector<128x256xf32>
    %cst_3 = arith.constant dense<0.000000e+00> : vector<8x256xf32>
    %38 = tpu.matmul %36, %37, %cst_3 {dimension_numbers = #tpu.dot_dimension_numbers<[1], [0], [0], [1], [0, 0, 1, 1], [], []>} : vector<8x128xf32>, vector<128x256xf32>, vector<8x256xf32> -> vector<8x256xf32>
    %c0_4 = arith.constant 0 : index
    %c0_5 = arith.constant 0 : index
    %39 = vector.load %arg3[%c0_4, %c0_5] : memref<8x256xf32, #tpu.memory_space<vmem>>, vector<8x256xf32>
    tpu.vector_store %arg3[%c0_4, %c0_5], %38 {strides = array<i32>} : memref<8x256xf32, #tpu.memory_space<vmem>>, vector<8x256xf32>,
    return
  }
  func.func @transform_0(%arg0: i32) -> (i32, i32) {
    %c0_i32 = arith.constant 0 : i32
    %c0_i32_0 = arith.constant 0 : i32
    return %arg0, %c0_i32 : i32, i32
  }
  func.func @transform_1(%arg0: i32) -> (i32, i32) {
    %c0_i32 = arith.constant 0 : i32
    %c0_i32_0 = arith.constant 0 : i32
    %c0_i32_1 = arith.constant 0 : i32
    return %c0_i32, %c0_i32_0 : i32, i32
  }
  func.func @transform_2(%arg0: i32) -> (i32, i32) {
    %c0_i32 = arith.constant 0 : i32
    %c0_i32_0 = arith.constant 0 : i32
    return %arg0, %c0_i32 : i32, i32
  }
}

module attributes {stable_mosaic.version = 11 : i64} {
  func.func @kernel(%arg0: i32, %arg1: memref<8x5xi32, #tpu.memory_space<vmem>>, %arg2: memref<128x256xf32, #tpu.memory_space<vmem>>, %arg3: memref<8x256xf32, #tpu.memory_space<vmem>>) attributes {dimension_semantics = [#tpu.dimension_semantics<parallel>], iteration_bounds = array<i64: 1>, scalar_prefetch = 0 : i64, scratch_operands = 0 : i64, tpu.core_type = #tpu.core_type<tc>, window_params = [{transform_indices = @transform_0, window_bounds = array<i64: 8, 5>}, {pipeline_mode = #tpu.pipeline_mode<synchronous>, transform_indices = @transform_1, window_bounds = array<i64: 128, 256>}, {transform_indices = @transform_2, window_bounds = array<i64: 8, 256>}]} {
    %c0 = arith.constant 0 : index
    %c0_0 = arith.constant 0 : index
    %0 = vector.load %arg1[%c0, %c0_0] : memref<8x5xi32, #tpu.memory_space<vmem>>, vector<8x5xi32>
    %c30_i32 = arith.constant 30 : i32
    %1 = vector.broadcast %c30_i32 : i32 to vector<8x5xi32>
    %2 = arith.cmpi eq, %0, %1 : vector<8x5xi32>
    %c127_i32 = arith.constant 127 : i32
    %3 = vector.broadcast %c127_i32 : i32 to vector<8x5xi32>
    %4 = arith.select %2, %3, %0 : vector<8x5xi1>, vector<8x5xi32>
    %5 = tpu.iota {dimensions = array<i32: 1>} : vector<8x128xi32>
    %cst = arith.constant 0.000000e+00 : f32
    %6 = vector.broadcast %cst : f32 to vector<8x128xf32>
    %7 = vector.extract_strided_slice %4 {offsets = [0, 0], sizes = [8, 1], strides = [1, 1]} : vector<8x5xi32> to vector<8x1xi32>
    %8 = vector.broadcast %7 : vector<8x1xi32> to vector<8x128xi32>
    %9 = arith.cmpi eq, %8, %5 : vector<8x128xi32>
    %10 = arith.extui %9 : vector<8x128xi1> to vector<8x128xi32>
    %11 = arith.sitofp %10 : vector<8x128xi32> to vector<8x128xf32>
    %12 = arith.addf %6, %11 : vector<8x128xf32>
    %13 = vector.extract_strided_slice %4 {offsets = [0, 1], sizes = [8, 1], strides = [1, 1]} : vector<8x5xi32> to vector<8x1xi32>
    %14 = vector.broadcast %13 : vector<8x1xi32> to vector<8x128xi32>
    %15 = arith.cmpi eq, %14, %5 : vector<8x128xi32>
    %16 = arith.extui %15 : vector<8x128xi1> to vector<8x128xi32>
    %17 = arith.sitofp %16 : vector<8x128xi32> to vector<8x128xf32>
    %18 = arith.addf %12, %17 : vector<8x128xf32>
    %19 = vector.extract_strided_slice %4 {offsets = [0, 2], sizes = [8, 1], strides = [1, 1]} : vector<8x5xi32> to vector<8x1xi32>
    %20 = vector.broadcast %19 : vector<8x1xi32> to vector<8x128xi32>
    %21 = arith.cmpi eq, %20, %5 : vector<8x128xi32>
    %22 = arith.extui %21 : vector<8x128xi1> to vector<8x128xi32>
    %23 = arith.sitofp %22 : vector<8x128xi32> to vector<8x128xf32>
    %24 = arith.addf %18, %23 : vector<8x128xf32>
    %25 = vector.extract_strided_slice %4 {offsets = [0, 3], sizes = [8, 1], strides = [1, 1]} : vector<8x5xi32> to vector<8x1xi32>
    %26 = vector.broadcast %25 : vector<8x1xi32> to vector<8x128xi32>
    %27 = arith.cmpi eq, %26, %5 : vector<8x128xi32>
    %28 = arith.extui %27 : vector<8x128xi1> to vector<8x128xi32>
    %29 = arith.sitofp %28 : vector<8x128xi32> to vector<8x128xf32>
    %30 = arith.addf %24, %29 : vector<8x128xf32>
    %31 = vector.extract_strided_slice %4 {offsets = [0, 4], sizes = [8, 1], strides = [1, 1]} : vector<8x5xi32> to vector<8x1xi32>
    %32 = vector.broadcast %31 : vector<8x1xi32> to vector<8x128xi32>
    %33 = arith.cmpi eq, %32, %5 : vector<8x128xi32>
    %34 = arith.extui %33 : vector<8x128xi1> to vector<8x128xi32>
    %35 = arith.sitofp %34 : vector<8x128xi32> to vector<8x128xf32>
    %36 = arith.addf %30, %35 : vector<8x128xf32>
    %c0_1 = arith.constant 0 : index
    %c0_2 = arith.constant 0 : index
    %37 = vector.load %arg2[%c0_1, %c0_2] : memref<128x256xf32, #tpu.memory_space<vmem>>, vector<128x256xf32>
    %cst_3 = arith.constant dense<0.000000e+00> : vector<8x256xf32>
    %38 = tpu.matmul %36, %37, %cst_3 {dimension_numbers = #tpu.dot_dimension_numbers<[1], [0], [0], [1], [0, 0, 1, 1], [], []>} : vector<8x128xf32>, vector<128x256xf32>, vector<8x256xf32> -> vector<8x256xf32>
    %c0_4 = arith.constant 0 : index
    %c0_5 = arith.constant 0 : index
    %39 = vector.load %arg3[%c0_4, %c0_5] : memref<8x256xf32, #tpu.memory_space<vmem>>, vector<8x256xf32>
    tpu.vector_store %arg3[%c0_4, %c0_5], %38 {strides = array<i32>} : memref<8x256xf32, #tpu.memory_space<vmem>>, vector<8x256xf32>,
    return
  }
  func.func @transform_0(%arg0: i32) -> (i32, i32) {
    %c0_i32 = arith.constant 0 : i32
    %c0_i32_0 = arith.constant 0 : i32
    return %arg0, %c0_i32 : i32, i32
  }
  func.func @transform_1(%arg0: i32) -> (i32, i32) {
    %c0_i32 = arith.constant 0 : i32
    %c0_i32_0 = arith.constant 0 : i32
    %c0_i32_1 = arith.constant 0 : i32
    return %c0_i32, %c0_i32_0 : i32, i32
  }
  func.func @transform_2(%arg0: i32) -> (i32, i32) {
    %c0_i32 = arith.constant 0 : i32
    %c0_i32_0 = arith.constant 0 : i32
    return %arg0, %c0_i32 : i32, i32
  }
}

</mosaic_0001>

<llo_original>
// kernel: tpu_custom_call.1
$region0: #{tpu_custom_call.1}
  #allocation0 [shape = 'u32[]', space=smem, size = 0x4, offset = 0x4, fixed_abs, tag = 'smem constant byte address 0x4 - core index']
  #allocation1 [shape = 'u32[144,128]{1,0:T(1,128)}', space=vmem, size = 0x12000, scoped, tag = 'internal scratch']
  %s0 = inlined_call_operand.hbm [shape: s32[8,5], index: 0, kind: input, shape index: {}]
  %s1 = inlined_call_operand.hbm [shape: f32[128,256], index: 1, kind: input, shape index: {}]
  %s2 = inlined_call_operand.hbm [shape: f32[8,256], index: 2, kind: output, shape index: {}]
  %s3 = sld [smem:[#allocation0]]
  $region26: #{tpu_custom_call.1} parent=0
    _
  %s5 = ssub.s32 1, %s3
  %s6 = scalar_select 0, %s5, %s3
  $region1: #{tpu_custom_call.1} parent=0
    #allocation2 [shape = 'u8[4096]{0}', space=vmem, size = 0x1000, scoped, tag = 'input window, operand 0, single buffered']
    #allocation3 [shape = 's32[1]{0}', space=sflag, size = 0x4, scoped, tag = 'scoped memory for tpu_custom_call.1']
    #allocation4 [shape = 's32[1]{0}', space=sflag, size = 0x4, scoped, tag = 'scoped memory for tpu_custom_call.1']
    #allocation5 [shape = 'u8[131072]{0}', space=vmem, size = 0x20000, scoped, tag = 'input window, operand 1, single buffered']
    #allocation6 [shape = 's32[1]{0}', space=sflag, size = 0x4, scoped, tag = 'scoped memory for tpu_custom_call.1']
    #allocation7 [shape = 'u8[8192]{0}', space=vmem, size = 0x2000, scoped, tag = 'output window, operand 0, single buffered']
    %7 = vsyncpa [#allocation3], 0
    %8 = vsyncpa [#allocation6], 0
    %9 = vsyncpa [#allocation4], 0
    // Predicated region
    $region2: #{tpu_custom_call.1} parent=1 // pred_check
      _
    $region3: #{tpu_custom_call.1} parent=1 // pred_check_branch
      %11 = sbr.rel (0) target = $region5
    $region4: #{tpu_custom_call.1} parent=1 // pred_region
      %s13 = ssub.s32 128, 128
      %14 = vsyncadd [#allocation3], %s13
      %s16 = sshll.u32 [#allocation2], 4
      %s17 = int_to_ptr.vmem [resolvable:$true] %s16
      %19 = dma.hbm_to_vmem [thread:$0]  %s0, 128, %s17, [#allocation3]
    $region5: #{tpu_custom_call.1} parent=1 // pred_fallthru
      _
    // Predicated region
    $region6: #{tpu_custom_call.1} parent=1 // pred_check
      _
    $region7: #{tpu_custom_call.1} parent=1 // pred_check_branch
      %21 = sbr.rel (0) target = $region9
    $region8: #{tpu_custom_call.1} parent=1 // pred_region
      %s23 = ssub.s32 4096, 4096
      %24 = vsyncadd [#allocation6], %s23
      %s25 = sshll.u32 [#allocation5], 4
      %s26 = int_to_ptr.vmem [resolvable:$true] %s25
      %31 = dma.hbm_to_vmem [thread:$0]  %s1, 4096, %s26, [#allocation6], 256, 256, 16
    $region9: #{tpu_custom_call.1} parent=1 // pred_fallthru
      _
    // Predicated region
    $region10: #{tpu_custom_call.1} parent=1 // pred_check
      _
    $region11: #{tpu_custom_call.1} parent=1 // pred_check_branch
      %33 = sbr.rel (0) target = $region13
    $region12: #{tpu_custom_call.1} parent=1 // pred_region
      %34 = dma.done [#allocation3], 128
    $region13: #{tpu_custom_call.1} parent=1 // pred_fallthru
      _
    // Predicated region
    $region14: #{tpu_custom_call.1} parent=1 // pred_check
      _
    $region15: #{tpu_custom_call.1} parent=1 // pred_check_branch
      %36 = sbr.rel (0) target = $region17
    $region16: #{tpu_custom_call.1} parent=1 // pred_region
      %37 = dma.done [#allocation6], 4096
    $region17: #{tpu_custom_call.1} parent=1 // pred_fallthru
      _
    %v38 = vld [vmem:[#allocation2] sm:$0xff]
    %vm39 = vcmp.eq.s32.totalorder %v38, 30
    %v40 = vsel %vm39, 127, %v38
    %v41 = vlaneseq
    %v42 = vand.u32 %v41, 127
    %43 = vset.pattern.permute.xlu0 0
    %44 = vperm.xlu0 %43, %v40
    %v45 = vpop.permute.xlu0 %44
    %vm46 = vcmp.eq.s32.totalorder %v45, %v42
    %v47 = vsel %vm46, 1, 0
    %v48 = vcvt.s32.f32 %v47
    %v49 = vadd.f32 %v48, 0.0
    %50 = vset.pattern.permute.xlu0 1
    %51 = vperm.xlu0 %50, %v40
    %v52 = vpop.permute.xlu0 %51
    %vm53 = vcmp.eq.s32.totalorder %v52, %v42
    %v54 = vsel %vm53, 1, 0
    %v55 = vcvt.s32.f32 %v54
    %v56 = vadd.f32 %v49, %v55
    %57 = vset.pattern.permute.xlu0 2
    %58 = vperm.xlu0 %57, %v40
    %v59 = vpop.permute.xlu0 %58
    %vm60 = vcmp.eq.s32.totalorder %v59, %v42
    %v61 = vsel %vm60, 1, 0
    %v62 = vcvt.s32.f32 %v61
    %v63 = vadd.f32 %v56, %v62
    %64 = vset.pattern.permute.xlu0 3
    %65 = vperm.xlu0 %64, %v40
    %v66 = vpop.permute.xlu0 %65
    %vm67 = vcmp.eq.s32.totalorder %v66, %v42
    %v68 = vsel %vm67, 1, 0
    %v69 = vcvt.s32.f32 %v68
    %v70 = vadd.f32 %v63, %v69
    %71 = vset.pattern.permute.xlu0 4
    %72 = vperm.xlu0 %71, %v40
    %v73 = vpop.permute.xlu0 %72
    %vm74 = vcmp.eq.s32.totalorder %v73, %v42
    %v75 = vsel %vm74, 1, 0
    %v76 = vcvt.s32.f32 %v75
    %v77 = vadd.f32 %v70, %v76
    %v78 = vld [vmem:[#allocation5] sm:$0xff]
    %v79 = vld [vmem:[#allocation5 + $0x8] sm:$0xff]
    %v80 = vld [vmem:[#allocation5 + $0x10] sm:$0xff]
    %v81 = vld [vmem:[#allocation5 + $0x18] sm:$0xff]
    %v82 = vld [vmem:[#allocation5 + $0x20] sm:$0xff]
    %v83 = vld [vmem:[#allocation5 + $0x28] sm:$0xff]
    %v84 = vld [vmem:[#allocation5 + $0x30] sm:$0xff]
    %v85 = vld [vmem:[#allocation5 + $0x38] sm:$0xff]
    %v86 = vld [vmem:[#allocation5 + $0x40] sm:$0xff]
    %v87 = vld [vmem:[#allocation5 + $0x48] sm:$0xff]
    %v88 = vld [vmem:[#allocation5 + $0x50] sm:$0xff]
    %v89 = vld [vmem:[#allocation5 + $0x58] sm:$0xff]
    %v90 = vld [vmem:[#allocation5 + $0x60] sm:$0xff]
    %v91 = vld [vmem:[#allocation5 + $0x68] sm:$0xff]
    %v92 = vld [vmem:[#allocation5 + $0x70] sm:$0xff]
    %v93 = vld [vmem:[#allocation5 + $0x78] sm:$0xff]
    %v94 = vld [vmem:[#allocation5 + $0x80] sm:$0xff]
    %v95 = vld [vmem:[#allocation5 + $0x88] sm:$0xff]
    %v96 = vld [vmem:[#allocation5 + $0x90] sm:$0xff]
    %v97 = vld [vmem:[#allocation5 + $0x98] sm:$0xff]
    %v98 = vld [vmem:[#allocation5 + $0xa0] sm:$0xff]
    %v99 = vld [vmem:[#allocation5 + $0xa8] sm:$0xff]
    %v100 = vld [vmem:[#allocation5 + $0xb0] sm:$0xff]
    %v101 = vld [vmem:[#allocation5 + $0xb8] sm:$0xff]
    %v102 = vld [vmem:[#allocation5 + $0xc0] sm:$0xff]
    %v103 = vld [vmem:[#allocation5 + $0xc8] sm:$0xff]
    %v104 = vld [vmem:[#allocation5 + $0xd0] sm:$0xff]
    %v105 = vld [vmem:[#allocation5 + $0xd8] sm:$0xff]
    %v106 = vld [vmem:[#allocation5 + $0xe0] sm:$0xff]
    %v107 = vld [vmem:[#allocation5 + $0xe8] sm:$0xff]
    %v108 = vld [vmem:[#allocation5 + $0xf0] sm:$0xff]
    %v109 = vld [vmem:[#allocation5 + $0xf8] sm:$0xff]
    %110 = vmatprep.subr.mxu0 %v109
    %111 = vmatpush1.msra.mxu0 %v108
    %112 = vmatprep.subr.mxu0 %v107
    %113 = vmatpush1.msra.mxu0 %v106
    %114 = vmatprep.subr.mxu0 %v105
    %115 = vmatpush1.msra.mxu0 %v104
    %116 = vmatprep.subr.mxu0 %v103
    %117 = vmatpush1.msra.mxu0 %v102
    %118 = vmatprep.subr.mxu0 %v101
    %119 = vmatpush1.msra.mxu0 %v100
    %120 = vmatprep.subr.mxu0 %v99
    %121 = vmatpush1.msra.mxu0 %v98
    %122 = vmatprep.subr.mxu0 %v97
    %123 = vmatpush1.msra.mxu0 %v96
    %124 = vmatprep.subr.mxu0 %v95
    %125 = vmatpush1.msra.mxu0 %v94
    %126 = vmatprep.subr.mxu0 %v93
    %127 = vmatpush1.msra.mxu0 %v92
    %128 = vmatprep.subr.mxu0 %v91
    %129 = vmatpush1.msra.mxu0 %v90
    %130 = vmatprep.subr.mxu0 %v89
    %131 = vmatpush1.msra.mxu0 %v88
    %132 = vmatprep.subr.mxu0 %v87
    %133 = vmatpush1.msra.mxu0 %v86
    %134 = vmatprep.subr.mxu0 %v85
    %135 = vmatpush1.msra.mxu0 %v84
    %136 = vmatprep.subr.mxu0 %v83
    %137 = vmatpush1.msra.mxu0 %v82
    %138 = vmatprep.subr.mxu0 %v81
    %139 = vmatpush1.msra.mxu0 %v80
    %140 = vmatprep.subr.mxu0 %v79
    %141 = vmatpush1.msra.mxu0 %v78
    %142 = vmatprep.subr.mxu0 0.0
    %143 = vmatpush2.msra.mxu0 0.0
    %144 = vmatprep.subr.mxu0 0.0
    %145 = vmatpush2.msra.mxu0 0.0
    %146 = vmatprep.subr.mxu0 0.0
    %147 = vmatpush2.msra.mxu0 0.0
    %148 = vmatprep.subr.mxu0 0.0
    %149 = vmatpush2.msra.mxu0 0.0
    %150 = vmatprep.subr.mxu0 0.0
    %151 = vmatpush2.msra.mxu0 0.0
    %152 = vmatprep.subr.mxu0 0.0
    %153 = vmatpush2.msra.mxu0 0.0
    %154 = vmatprep.subr.mxu0 0.0
    %155 = vmatpush2.msra.mxu0 0.0
    %156 = vmatprep.subr.mxu0 0.0
    %157 = vmatpush2.msra.mxu0 0.0
    %158 = vmatprep.subr.mxu0 0.0
    %159 = vmatpush2.msra.mxu0 0.0
    %160 = vmatprep.subr.mxu0 0.0
    %161 = vmatpush2.msra.mxu0 0.0
    %162 = vmatprep.subr.mxu0 0.0
    %163 = vmatpush2.msra.mxu0 0.0
    %164 = vmatprep.subr.mxu0 0.0
    %165 = vmatpush2.msra.mxu0 0.0
    %166 = vmatprep.subr.mxu0 0.0
    %167 = vmatpush2.msra.mxu0 0.0
    %168 = vmatprep.subr.mxu0 0.0
    %169 = vmatpush2.msra.mxu0 0.0
    %170 = vmatprep.subr.mxu0 0.0
    %171 = vmatpush2.msra.mxu0 0.0
    %172 = vmatprep.subr.mxu0 0.0
    %173 = vmatpush2.msra.mxu0 0.0
    %174 = vmatprep.mubr.f32.mxu0 0.0
    %175 = vmatmul.mubr.f32.gmra.mxu0 %v77
    %v176 = vpop.f32.mrf.mxu0
    %v177 = vadd.f32 0.0, %v176
    %v178 = vpop.f32.mrf.mxu0
    %v179 = vadd.f32 0.0, %v178
    %180 = vdwg.mxu0
    %181 = vst [vmem:[#allocation7] sm:$0xff] %v177
    %182 = vst [vmem:[#allocation7 + $0x8] sm:$0xff] %v179
    // Predicated region
    $region18: #{tpu_custom_call.1} parent=1 // pred_check
      _
    $region19: #{tpu_custom_call.1} parent=1 // pred_check_branch
      %184 = sbr.rel (0) target = $region21
    $region20: #{tpu_custom_call.1} parent=1 // pred_region
      %s186 = ssub.s32 256, 256
      %187 = vsyncadd [#allocation4], %s186
      %s189 = sshll.u32 [#allocation7], 4
      %s190 = int_to_ptr.vmem [resolvable:$true] %s189
      %192 = dma.vmem_to_hbm [thread:$0]  %s190, 256, %s2, [#allocation4]
    $region21: #{tpu_custom_call.1} parent=1 // pred_fallthru
      _
    // Predicated region
    $region22: #{tpu_custom_call.1} parent=1 // pred_check
      _
    $region23: #{tpu_custom_call.1} parent=1 // pred_check_branch
      %194 = sbr.rel (0) target = $region25
    $region24: #{tpu_custom_call.1} parent=1 // pred_region
      %195 = dma.done [#allocation4], 256
    $region25: #{tpu_custom_call.1} parent=1 // pred_fallthru
      _
    %196 = vsyncpa [#allocation3], 1
    %197 = vsyncpa [#allocation6], 1
    %198 = vsyncpa [#allocation4], 1

// kernel: tpu_custom_call.1
$region0: #{tpu_custom_call.1}
  #allocation0 [shape = 'u32[]', space=smem, size = 0x4, offset = 0x4, fixed_abs, tag = 'smem constant byte address 0x4 - core index']
  #allocation1 [shape = 'u32[144,128]{1,0:T(1,128)}', space=vmem, size = 0x12000, scoped, tag = 'internal scratch']
  %s0 = inlined_call_operand.hbm [shape: s32[8,5], index: 0, kind: input, shape index: {}]
  %s1 = inlined_call_operand.hbm [shape: f32[128,256], index: 1, kind: input, shape index: {}]
  %s2 = inlined_call_operand.hbm [shape: f32[8,256], index: 2, kind: output, shape index: {}]
  %s3 = sld [smem:[#allocation0]]
  $region26: #{tpu_custom_call.1} parent=0
    _
  %s5 = ssub.s32 1, %s3
  %s6 = scalar_select 0, %s5, %s3
  $region1: #{tpu_custom_call.1} parent=0
    #allocation2 [shape = 'u8[4096]{0}', space=vmem, size = 0x1000, scoped, tag = 'input window, operand 0, single buffered']
    #allocation3 [shape = 's32[1]{0}', space=sflag, size = 0x4, scoped, tag = 'scoped memory for tpu_custom_call.1']
    #allocation4 [shape = 's32[1]{0}', space=sflag, size = 0x4, scoped, tag = 'scoped memory for tpu_custom_call.1']
    #allocation5 [shape = 'u8[131072]{0}', space=vmem, size = 0x20000, scoped, tag = 'input window, operand 1, single buffered']
    #allocation6 [shape = 's32[1]{0}', space=sflag, size = 0x4, scoped, tag = 'scoped memory for tpu_custom_call.1']
    #allocation7 [shape = 'u8[8192]{0}', space=vmem, size = 0x2000, scoped, tag = 'output window, operand 0, single buffered']
    %7 = vsyncpa [#allocation3], 0
    %8 = vsyncpa [#allocation6], 0
    %9 = vsyncpa [#allocation4], 0
    // Predicated region
    $region2: #{tpu_custom_call.1} parent=1 // pred_check
      _
    $region3: #{tpu_custom_call.1} parent=1 // pred_check_branch
      %11 = sbr.rel (0) target = $region5
    $region4: #{tpu_custom_call.1} parent=1 // pred_region
      %s13 = ssub.s32 128, 128
      %14 = vsyncadd [#allocation3], %s13
      %s16 = sshll.u32 [#allocation2], 4
      %s17 = int_to_ptr.vmem [resolvable:$true] %s16
      %19 = dma.hbm_to_vmem [thread:$0]  %s0, 128, %s17, [#allocation3]
    $region5: #{tpu_custom_call.1} parent=1 // pred_fallthru
      _
    // Predicated region
    $region6: #{tpu_custom_call.1} parent=1 // pred_check
      _
    $region7: #{tpu_custom_call.1} parent=1 // pred_check_branch
      %21 = sbr.rel (0) target = $region9
    $region8: #{tpu_custom_call.1} parent=1 // pred_region
      %s23 = ssub.s32 4096, 4096
      %24 = vsyncadd [#allocation6], %s23
      %s25 = sshll.u32 [#allocation5], 4
      %s26 = int_to_ptr.vmem [resolvable:$true] %s25
      %31 = dma.hbm_to_vmem [thread:$0]  %s1, 4096, %s26, [#allocation6], 256, 256, 16
    $region9: #{tpu_custom_call.1} parent=1 // pred_fallthru
      _
    // Predicated region
    $region10: #{tpu_custom_call.1} parent=1 // pred_check
      _
    $region11: #{tpu_custom_call.1} parent=1 // pred_check_branch
      %33 = sbr.rel (0) target = $region13
    $region12: #{tpu_custom_call.1} parent=1 // pred_region
      %34 = dma.done [#allocation3], 128
    $region13: #{tpu_custom_call.1} parent=1 // pred_fallthru
      _
    // Predicated region
    $region14: #{tpu_custom_call.1} parent=1 // pred_check
      _
    $region15: #{tpu_custom_call.1} parent=1 // pred_check_branch
      %36 = sbr.rel (0) target = $region17
    $region16: #{tpu_custom_call.1} parent=1 // pred_region
      %37 = dma.done [#allocation6], 4096
    $region17: #{tpu_custom_call.1} parent=1 // pred_fallthru
      _
    %v38 = vld [vmem:[#allocation2] sm:$0xff]
    %vm39 = vcmp.eq.s32.totalorder %v38, 30
    %v40 = vsel %vm39, 127, %v38
    %v41 = vlaneseq
    %v42 = vand.u32 %v41, 127
    %43 = vset.pattern.permute.xlu0 0
    %44 = vperm.xlu0 %43, %v40
    %v45 = vpop.permute.xlu0 %44
    %vm46 = vcmp.eq.s32.totalorder %v45, %v42
    %v47 = vsel %vm46, 1, 0
    %v48 = vcvt.s32.f32 %v47
    %v49 = vadd.f32 %v48, 0.0
    %50 = vset.pattern.permute.xlu0 1
    %51 = vperm.xlu0 %50, %v40
    %v52 = vpop.permute.xlu0 %51
    %vm53 = vcmp.eq.s32.totalorder %v52, %v42
    %v54 = vsel %vm53, 1, 0
    %v55 = vcvt.s32.f32 %v54
    %v56 = vadd.f32 %v49, %v55
    %57 = vset.pattern.permute.xlu0 2
    %58 = vperm.xlu0 %57, %v40
    %v59 = vpop.permute.xlu0 %58
    %vm60 = vcmp.eq.s32.totalorder %v59, %v42
    %v61 = vsel %vm60, 1, 0
    %v62 = vcvt.s32.f32 %v61
    %v63 = vadd.f32 %v56, %v62
    %64 = vset.pattern.permute.xlu0 3
    %65 = vperm.xlu0 %64, %v40
    %v66 = vpop.permute.xlu0 %65
    %vm67 = vcmp.eq.s32.totalorder %v66, %v42
    %v68 = vsel %vm67, 1, 0
    %v69 = vcvt.s32.f32 %v68
    %v70 = vadd.f32 %v63, %v69
    %71 = vset.pattern.permute.xlu0 4
    %72 = vperm.xlu0 %71, %v40
    %v73 = vpop.permute.xlu0 %72
    %vm74 = vcmp.eq.s32.totalorder %v73, %v42
    %v75 = vsel %vm74, 1, 0
    %v76 = vcvt.s32.f32 %v75
    %v77 = vadd.f32 %v70, %v76
    %v78 = vld [vmem:[#allocation5] sm:$0xff]
    %v79 = vld [vmem:[#allocation5 + $0x8] sm:$0xff]
    %v80 = vld [vmem:[#allocation5 + $0x10] sm:$0xff]
    %v81 = vld [vmem:[#allocation5 + $0x18] sm:$0xff]
    %v82 = vld [vmem:[#allocation5 + $0x20] sm:$0xff]
    %v83 = vld [vmem:[#allocation5 + $0x28] sm:$0xff]
    %v84 = vld [vmem:[#allocation5 + $0x30] sm:$0xff]
    %v85 = vld [vmem:[#allocation5 + $0x38] sm:$0xff]
    %v86 = vld [vmem:[#allocation5 + $0x40] sm:$0xff]
    %v87 = vld [vmem:[#allocation5 + $0x48] sm:$0xff]
    %v88 = vld [vmem:[#allocation5 + $0x50] sm:$0xff]
    %v89 = vld [vmem:[#allocation5 + $0x58] sm:$0xff]
    %v90 = vld [vmem:[#allocation5 + $0x60] sm:$0xff]
    %v91 = vld [vmem:[#allocation5 + $0x68] sm:$0xff]
    %v92 = vld [vmem:[#allocation5 + $0x70] sm:$0xff]
    %v93 = vld [vmem:[#allocation5 + $0x78] sm:$0xff]
    %v94 = vld [vmem:[#allocation5 + $0x80] sm:$0xff]
    %v95 = vld [vmem:[#allocation5 + $0x88] sm:$0xff]
    %v96 = vld [vmem:[#allocation5 + $0x90] sm:$0xff]
    %v97 = vld [vmem:[#allocation5 + $0x98] sm:$0xff]
    %v98 = vld [vmem:[#allocation5 + $0xa0] sm:$0xff]
    %v99 = vld [vmem:[#allocation5 + $0xa8] sm:$0xff]
    %v100 = vld [vmem:[#allocation5 + $0xb0] sm:$0xff]
    %v101 = vld [vmem:[#allocation5 + $0xb8] sm:$0xff]
    %v102 = vld [vmem:[#allocation5 + $0xc0] sm:$0xff]
    %v103 = vld [vmem:[#allocation5 + $0xc8] sm:$0xff]
    %v104 = vld [vmem:[#allocation5 + $0xd0] sm:$0xff]
    %v105 = vld [vmem:[#allocation5 + $0xd8] sm:$0xff]
    %v106 = vld [vmem:[#allocation5 + $0xe0] sm:$0xff]
    %v107 = vld [vmem:[#allocation5 + $0xe8] sm:$0xff]
    %v108 = vld [vmem:[#allocation5 + $0xf0] sm:$0xff]
    %v109 = vld [vmem:[#allocation5 + $0xf8] sm:$0xff]
    %110 = vmatprep.subr.mxu0 %v109
    %111 = vmatpush1.msra.mxu0 %v108
    %112 = vmatprep.subr.mxu0 %v107
    %113 = vmatpush1.msra.mxu0 %v106
    %114 = vmatprep.subr.mxu0 %v105
    %115 = vmatpush1.msra.mxu0 %v104
    %116 = vmatprep.subr.mxu0 %v103
    %117 = vmatpush1.msra.mxu0 %v102
    %118 = vmatprep.subr.mxu0 %v101
    %119 = vmatpush1.msra.mxu0 %v100
    %120 = vmatprep.subr.mxu0 %v99
    %121 = vmatpush1.msra.mxu0 %v98
    %122 = vmatprep.subr.mxu0 %v97
    %123 = vmatpush1.msra.mxu0 %v96
    %124 = vmatprep.subr.mxu0 %v95
    %125 = vmatpush1.msra.mxu0 %v94
    %126 = vmatprep.subr.mxu0 %v93
    %127 = vmatpush1.msra.mxu0 %v92
    %128 = vmatprep.subr.mxu0 %v91
    %129 = vmatpush1.msra.mxu0 %v90
    %130 = vmatprep.subr.mxu0 %v89
    %131 = vmatpush1.msra.mxu0 %v88
    %132 = vmatprep.subr.mxu0 %v87
    %133 = vmatpush1.msra.mxu0 %v86
    %134 = vmatprep.subr.mxu0 %v85
    %135 = vmatpush1.msra.mxu0 %v84
    %136 = vmatprep.subr.mxu0 %v83
    %137 = vmatpush1.msra.mxu0 %v82
    %138 = vmatprep.subr.mxu0 %v81
    %139 = vmatpush1.msra.mxu0 %v80
    %140 = vmatprep.subr.mxu0 %v79
    %141 = vmatpush1.msra.mxu0 %v78
    %142 = vmatprep.subr.mxu0 0.0
    %143 = vmatpush2.msra.mxu0 0.0
    %144 = vmatprep.subr.mxu0 0.0
    %145 = vmatpush2.msra.mxu0 0.0
    %146 = vmatprep.subr.mxu0 0.0
    %147 = vmatpush2.msra.mxu0 0.0
    %148 = vmatprep.subr.mxu0 0.0
    %149 = vmatpush2.msra.mxu0 0.0
    %150 = vmatprep.subr.mxu0 0.0
    %151 = vmatpush2.msra.mxu0 0.0
    %152 = vmatprep.subr.mxu0 0.0
    %153 = vmatpush2.msra.mxu0 0.0
    %154 = vmatprep.subr.mxu0 0.0
    %155 = vmatpush2.msra.mxu0 0.0
    %156 = vmatprep.subr.mxu0 0.0
    %157 = vmatpush2.msra.mxu0 0.0
    %158 = vmatprep.subr.mxu0 0.0
    %159 = vmatpush2.msra.mxu0 0.0
    %160 = vmatprep.subr.mxu0 0.0
    %161 = vmatpush2.msra.mxu0 0.0
    %162 = vmatprep.subr.mxu0 0.0
    %163 = vmatpush2.msra.mxu0 0.0
    %164 = vmatprep.subr.mxu0 0.0
    %165 = vmatpush2.msra.mxu0 0.0
    %166 = vmatprep.subr.mxu0 0.0
    %167 = vmatpush2.msra.mxu0 0.0
    %168 = vmatprep.subr.mxu0 0.0
    %169 = vmatpush2.msra.mxu0 0.0
    %170 = vmatprep.subr.mxu0 0.0
    %171 = vmatpush2.msra.mxu0 0.0
    %172 = vmatprep.subr.mxu0 0.0
    %173 = vmatpush2.msra.mxu0 0.0
    %174 = vmatprep.mubr.f32.mxu0 0.0
    %175 = vmatmul.mubr.f32.gmra.mxu0 %v77
    %v176 = vpop.f32.mrf.mxu0
    %v177 = vadd.f32 0.0, %v176
    %v178 = vpop.f32.mrf.mxu0
    %v179 = vadd.f32 0.0, %v178
    %180 = vdwg.mxu0
    %181 = vst [vmem:[#allocation7] sm:$0xff] %v177
    %182 = vst [vmem:[#allocation7 + $0x8] sm:$0xff] %v179
    // Predicated region
    $region18: #{tpu_custom_call.1} parent=1 // pred_check
      _
    $region19: #{tpu_custom_call.1} parent=1 // pred_check_branch
      %184 = sbr.rel (0) target = $region21
    $region20: #{tpu_custom_call.1} parent=1 // pred_region
      %s186 = ssub.s32 256, 256
      %187 = vsyncadd [#allocation4], %s186
      %s189 = sshll.u32 [#allocation7], 4
      %s190 = int_to_ptr.vmem [resolvable:$true] %s189
      %192 = dma.vmem_to_hbm [thread:$0]  %s190, 256, %s2, [#allocation4]
    $region21: #{tpu_custom_call.1} parent=1 // pred_fallthru
      _
    // Predicated region
    $region22: #{tpu_custom_call.1} parent=1 // pred_check
      _
    $region23: #{tpu_custom_call.1} parent=1 // pred_check_branch
      %194 = sbr.rel (0) target = $region25
    $region24: #{tpu_custom_call.1} parent=1 // pred_region
      %195 = dma.done [#allocation4], 256
    $region25: #{tpu_custom_call.1} parent=1 // pred_fallthru
      _
    %196 = vsyncpa [#allocation3], 1
    %197 = vsyncpa [#allocation6], 1
    %198 = vsyncpa [#allocation4], 1

</llo_original>
